<compile_context>
chip_gen: v5e
topology: v5e:2x2
jax: 0.10.0
libtpu: 0.0.40
codegen_flags: <defaults>
</compile_context>

<pallas_src>
import functools

import jax
import jax.numpy as jnp
import numpy as np
from jax.experimental import pallas as pl
from jax.experimental.pallas import tpu as pltpu


def _sigmoid(z):
    # Numerically-stable sigmoid; tanh runs on the EUP slot.
    return 0.5 * (jnp.tanh(0.5 * z) + 1.0)


def _sam_kernel(hw, shifts,
                wmix_ref,   # SMEM (2,)   softmax-ed mixing weights
                b3_ref,     # SMEM (1,)   3x3 conv bias
                x_ref,      # VMEM (Bblk, C, HWp)
                w1t_ref,    # VMEM (C, C4)   1x1 conv #1 weight (pre-transposed)
                b1_ref,     # VMEM (1, C4)
                w2t_ref,    # VMEM (C4, C)   1x1 conv #2 weight (pre-transposed)
                b2_ref,     # VMEM (1, C)
                w3t_ref,    # VMEM (9, C)    3x3 conv weight, tap-major
                mask_ref,   # VMEM (9, HWp)  precomputed zero-padding masks
                o_ref):     # VMEM (Bblk, C, HWp)
    Bblk, C, HWp = x_ref.shape
    inv_hw = 1.0 / float(hw)

    # -------- channel attention: mean-pool -> 1x1 -> ReLU -> 1x1 -> sigmoid -----
    pooled = jnp.sum(x_ref[...].astype(jnp.float32), axis=-1) * inv_hw   # (Bblk, C)
    hidden = jnp.maximum(
        jnp.dot(pooled, w1t_ref[...], preferred_element_type=jnp.float32)
        + b1_ref[...], 0.0)                                              # (Bblk, C4)
    ch_att = _sigmoid(
        jnp.dot(hidden, w2t_ref[...], preferred_element_type=jnp.float32)
        + b2_ref[...])                                                   # (Bblk, C)

    # -------- spatial attention: 3x3 conv (C->1, pad=1) -> sigmoid --------------
    # Channel contraction as a single batched MXU matmul (flash-attention style):
    # taps[b, t, p] = sum_c w3[c, t] * x[b, c, p].
    w3t_b = jnp.broadcast_to(w3t_ref[...].astype(jnp.float32)[None], (Bblk, 9, C))
    taps = jnp.einsum('btc,bcp->btp', w3t_b, x_ref[...].astype(jnp.float32),
                      preferred_element_type=jnp.float32)                # (Bblk, 9, HWp)

    acc = jnp.zeros((Bblk, HWp), jnp.float32)
    for t, shift in enumerate(shifts):
        slab = taps[:, t, :]                                             # (Bblk, HWp)
        if shift:
            slab = pltpu.roll(slab, shift, axis=1)                       # XLU lane rotate
        # Border mask is applied AFTER the roll (rolls wrap garbage across
        # row/image boundaries); masks are precomputed host-side.
        acc = acc + slab * mask_ref[t:t + 1, :]
    sp_att = _sigmoid(acc + b3_ref[0])                                   # (Bblk, HWp)

    # -------- mix + single lane-dense full-block store ---------------------------
    gain = (wmix_ref[0] * ch_att[:, :, None]
            + wmix_ref[1] * sp_att[:, None, :])                          # (Bblk, C, HWp)
    o_ref[...] = (gain * x_ref[...].astype(jnp.float32)).astype(o_ref.dtype)


def _conv3x3_taps(H, W, HWp):
    """Host-side: (9, HWp) zero-padding masks + the 9 static lane-roll amounts."""
    HW = H * W
    p = np.arange(HW)
    row, col = p // W, p % W
    masks, shifts = [], []
    for ky in range(3):
        for kx in range(3):
            sy, sx = ky - 1, kx - 1
            valid = ((row + sy >= 0) & (row + sy < H) &
                     (col + sx >= 0) & (col + sx < W))
            m = np.zeros(HWp, np.float32)
            m[:HW] = valid
            masks.append(m)
            shifts.append(int((-(sy * W + sx)) % HWp))   # roll by -d (mod HWp)
    return np.stack(masks, 0), tuple(shifts)


def _pick_batch_block(B, image_bytes, *, target_block=2 << 20, min_block=1 << 20,
                      vmem_budget=28 << 20):
    """Byte-budget batch blocking for this HBM-bound kernel.

    Aim for ~1-4 MiB blocks (amortizes the ~0.35us/step overhead, long DMAs),
    keep 4x block (double-buffered in + out) inside a budget safe on every
    generation (v7x: 64 MiB/TC physical, 32 MiB scoped default), and prefer a
    grid of >= 2 steps when it costs nothing so v7x can use both TensorCores.
    """
    divisors = [d for d in range(1, B + 1) if B % d == 0]
    cap = max(1, min(target_block // image_bytes, (vmem_budget // 4) // image_bytes))
    fitting = [d for d in divisors if d <= cap] or [1]
    bblk = max(fitting)
    if B // bblk < 2:
        alts = [d for d in fitting if B // d >= 2]
        if alts:
            alt = max(alts)
            # Split only if blocks stay >= min_block, or if the whole batch is
            # already tiny (splitting is then free and helps dual-TC chips).
            if alt * image_bytes >= min_block or bblk * image_bytes < min_block:
                bblk = alt
    return bblk


def spatial_attention_mixed(x, params):
    """x: (B, C, H, W), params: dict of PyTorch-shaped weights."""
    B, C, H, W = x.shape
    C4 = C // 4
    HW = H * W
    HWp = ((HW + 127) // 128) * 128   # keep the lane dim a full 128-multiple

    # glue: parameter reshapes / transposes + 2-element softmax (outside kernel)
    wmix = jax.nn.softmax(params["mix"].astype(jnp.float32))                 # (2,)
    w1t = jnp.transpose(params["w1"].reshape(C4, C)).astype(jnp.float32)     # (C, C4)
    b1 = params["b1"].reshape(1, C4).astype(jnp.float32)
    w2t = jnp.transpose(params["w2"].reshape(C, C4)).astype(jnp.float32)     # (C4, C)
    b2 = params["b2"].reshape(1, C).astype(jnp.float32)
    w3t = jnp.transpose(params["w3"][0].reshape(C, 9)).astype(jnp.float32)   # (9, C)
    b3 = params["b3"].reshape(1).astype(jnp.float32)

    mask_np, shifts = _conv3x3_taps(H, W, HWp)
    mask = jnp.asarray(mask_np)                                              # (9, HWp)

    x_flat = x.reshape(B, C, HW)
    if HWp != HW:
        x_flat = jnp.pad(x_flat, ((0, 0), (0, 0), (0, HWp - HW)))

    image_bytes = C * HWp * x_flat.dtype.itemsize
    Bblk = _pick_batch_block(B, image_bytes)
    grid = (B // Bblk,)
    block_bytes = Bblk * image_bytes

    # double-buffered input + output blocks + small margin for weights / mask /
    # compiler-internal scratch; stays within every generation's scoped VMEM.
    vmem_limit = int(min(48 << 20, max(16 << 20, 4 * block_bytes + (2 << 20))))

    kernel = pl.pallas_call(
        functools.partial(_sam_kernel, HW, shifts),
        out_shape=jax.ShapeDtypeStruct((B, C, HWp), x.dtype),
        grid_spec=pltpu.PrefetchScalarGridSpec(
            num_scalar_prefetch=0,
            grid=grid,
            in_specs=[
                pl.BlockSpec(memory_space=pltpu.MemorySpace.SMEM),       # wmix
                pl.BlockSpec(memory_space=pltpu.MemorySpace.SMEM),       # b3
                pl.BlockSpec((Bblk, C, HWp), lambda b: (b, 0, 0)),       # x
                pl.BlockSpec((C, C4), lambda b: (0, 0)),                 # w1t
                pl.BlockSpec((1, C4), lambda b: (0, 0)),                 # b1
                pl.BlockSpec((C4, C), lambda b: (0, 0)),                 # w2t
                pl.BlockSpec((1, C), lambda b: (0, 0)),                  # b2
                pl.BlockSpec((9, C), lambda b: (0, 0)),                  # w3t
                pl.BlockSpec((9, HWp), lambda b: (0, 0)),                # masks
            ],
            out_specs=pl.BlockSpec((Bblk, C, HWp), lambda b: (b, 0, 0)),
        ),
        compiler_params=pltpu.CompilerParams(
            dimension_semantics=("parallel",),
            vmem_limit_bytes=vmem_limit,
        ),
    )
    out = kernel(wmix, b3, x_flat, w1t, b1, w2t, b2, w3t, mask)
    if HWp != HW:
        out = out[..., :HW]
    return out.reshape(B, C, H, W)


def reference(x, params):
    """Pure-JAX reference matching the PyTorch forward exactly."""
    dn = ("NCHW", "OIHW", "NCHW")
    hp = jax.lax.Precision.HIGHEST
    wmix = jax.nn.softmax(params["mix"])
    pooled = jnp.mean(x, axis=(2, 3), keepdims=True)
    h = jax.lax.conv_general_dilated(pooled, params["w1"], (1, 1), "VALID",
                                     dimension_numbers=dn, precision=hp)
    h = jax.nn.relu(h + params["b1"].reshape(1, -1, 1, 1))
    ca = jax.nn.sigmoid(
        jax.lax.conv_general_dilated(h, params["w2"], (1, 1), "VALID",
                                     dimension_numbers=dn, precision=hp)
        + params["b2"].reshape(1, -1, 1, 1))
    channel_out = x * ca
    sa = jax.nn.sigmoid(
        jax.lax.conv_general_dilated(x, params["w3"], (1, 1), ((1, 1), (1, 1)),
                                     dimension_numbers=dn, precision=hp)
        + params["b3"].reshape(1, -1, 1, 1))
    spatial_out = x * sa
    return wmix[0] * channel_out + wmix[1] * spatial_out


if __name__ == "__main__":
    key = jax.random.PRNGKey(0)
    B, C, H, W = 2, 8, 16, 16
    C4 = C // 4
    ks = jax.random.split(key, 8)
    x = jax.random.normal(ks[0], (B, C, H, W), jnp.float32)
    params = {
        "w1": jax.random.normal(ks[1], (C4, C, 1, 1), jnp.float32) * 0.3,
        "b1": jax.random.normal(ks[2], (C4,), jnp.float32) * 0.1,
        "w2": jax.random.normal(ks[3], (C, C4, 1, 1), jnp.float32) * 0.3,
        "b2": jax.random.normal(ks[4], (C,), jnp.float32) * 0.1,
        "w3": jax.random.normal(ks[5], (1, C, 3, 3), jnp.float32) * 0.3,
        "b3": jax.random.normal(ks[6], (1,), jnp.float32) * 0.1,
        "mix": jax.random.normal(ks[7], (2,), jnp.float32),
    }

    out = spatial_attention_mixed(x, params)
    out = jax.block_until_ready(out)

    ref = reference(x, params)
    assert out.shape == x.shape and out.dtype == x.dtype
    np.testing.assert_allclose(np.asarray(out), np.asarray(ref), rtol=5e-3, atol=5e-3)
    print("KERNEL_OK")
</pallas_src>

<mosaic_0001>
module attributes {stable_mosaic.version = 11 : i64} {
  func.func @_sam_kernel(%arg0: i32, %arg1: memref<2xf32, #tpu.memory_space<smem>>, %arg2: memref<1xf32, #tpu.memory_space<smem>>, %arg3: memref<1x8x256xf32, #tpu.memory_space<vmem>>, %arg4: memref<8x2xf32, #tpu.memory_space<vmem>>, %arg5: memref<1x2xf32, #tpu.memory_space<vmem>>, %arg6: memref<2x8xf32, #tpu.memory_space<vmem>>, %arg7: memref<1x8xf32, #tpu.memory_space<vmem>>, %arg8: memref<9x8xf32, #tpu.memory_space<vmem>>, %arg9: memref<9x256xf32, #tpu.memory_space<vmem>>, %arg10: memref<1x8x256xf32, #tpu.memory_space<vmem>>) attributes {dimension_semantics = [#tpu.dimension_semantics<parallel>], iteration_bounds = array<i64: 2>, scalar_prefetch = 0 : i64, scratch_operands = 0 : i64, tpu.core_type = #tpu.core_type<tc>, window_params = [{transform_indices = @transform_0, window_bounds = array<i64: 2>}, {transform_indices = @transform_1, window_bounds = array<i64: 1>}, {transform_indices = @transform_2, window_bounds = array<i64: 1, 8, 256>}, {pipeline_mode = #tpu.pipeline_mode<synchronous>, transform_indices = @transform_3, window_bounds = array<i64: 8, 2>}, {pipeline_mode = #tpu.pipeline_mode<synchronous>, transform_indices = @transform_4, window_bounds = array<i64: 1, 2>}, {pipeline_mode = #tpu.pipeline_mode<synchronous>, transform_indices = @transform_5, window_bounds = array<i64: 2, 8>}, {pipeline_mode = #tpu.pipeline_mode<synchronous>, transform_indices = @transform_6, window_bounds = array<i64: 1, 8>}, {pipeline_mode = #tpu.pipeline_mode<synchronous>, transform_indices = @transform_7, window_bounds = array<i64: 9, 8>}, {pipeline_mode = #tpu.pipeline_mode<synchronous>, transform_indices = @transform_8, window_bounds = array<i64: 9, 256>}, {transform_indices = @transform_9, window_bounds = array<i64: 1, 8, 256>}]} {
    %c0 = arith.constant 0 : index
    %c0_0 = arith.constant 0 : index
    %c0_1 = arith.constant 0 : index
    %0 = vector.load %arg3[%c0, %c0_0, %c0_1] : memref<1x8x256xf32, #tpu.memory_space<vmem>>, vector<1x8x256xf32>
    %cst = arith.constant dense<0.000000e+00> : vector<1x8xf32>
    %1 = vector.multi_reduction <add>, %0, %cst [2] : vector<1x8x256xf32> to vector<1x8xf32>
    %cst_2 = arith.constant 3.906250e-03 : f32
    %2 = vector.broadcast %cst_2 : f32 to vector<1x8xf32>
    %3 = arith.mulf %1, %2 : vector<1x8xf32>
    %c0_3 = arith.constant 0 : index
    %c0_4 = arith.constant 0 : index
    %4 = vector.load %arg4[%c0_3, %c0_4] : memref<8x2xf32, #tpu.memory_space<vmem>>, vector<8x2xf32>
    %cst_5 = arith.constant dense<0.000000e+00> : vector<1x2xf32>
    %5 = tpu.matmul %3, %4, %cst_5 {dimension_numbers = #tpu.dot_dimension_numbers<[1], [0], [0], [1], [0, 0, 1, 1], [], []>} : vector<1x8xf32>, vector<8x2xf32>, vector<1x2xf32> -> vector<1x2xf32>
    %c0_6 = arith.constant 0 : index
    %c0_7 = arith.constant 0 : index
    %6 = vector.load %arg5[%c0_6, %c0_7] : memref<1x2xf32, #tpu.memory_space<vmem>>, vector<1x2xf32>
    %7 = arith.addf %5, %6 : vector<1x2xf32>
    %cst_8 = arith.constant 0.000000e+00 : f32
    %8 = vector.broadcast %cst_8 : f32 to vector<1x2xf32>
    %9 = arith.maximumf %7, %8 : vector<1x2xf32>
    %c0_9 = arith.constant 0 : index
    %c0_10 = arith.constant 0 : index
    %10 = vector.load %arg6[%c0_9, %c0_10] : memref<2x8xf32, #tpu.memory_space<vmem>>, vector<2x8xf32>
    %cst_11 = arith.constant dense<0.000000e+00> : vector<1x8xf32>
    %11 = tpu.matmul %9, %10, %cst_11 {dimension_numbers = #tpu.dot_dimension_numbers<[1], [0], [0], [1], [0, 0, 1, 1], [], []>} : vector<1x2xf32>, vector<2x8xf32>, vector<1x8xf32> -> vector<1x8xf32>
    %c0_12 = arith.constant 0 : index
    %c0_13 = arith.constant 0 : index
    %12 = vector.load %arg7[%c0_12, %c0_13] : memref<1x8xf32, #tpu.memory_space<vmem>>, vector<1x8xf32>
    %13 = arith.addf %11, %12 : vector<1x8xf32>
    %cst_14 = arith.constant 5.000000e-01 : f32
    %14 = vector.broadcast %cst_14 : f32 to vector<1x8xf32>
    %15 = arith.mulf %14, %13 : vector<1x8xf32>
    %16 = math.tanh %15 : vector<1x8xf32>
    %cst_15 = arith.constant 1.000000e+00 : f32
    %17 = vector.broadcast %cst_15 : f32 to vector<1x8xf32>
    %18 = arith.addf %16, %17 : vector<1x8xf32>
    %cst_16 = arith.constant 5.000000e-01 : f32
    %19 = vector.broadcast %cst_16 : f32 to vector<1x8xf32>
    %20 = arith.mulf %19, %18 : vector<1x8xf32>
    %c0_17 = arith.constant 0 : index
    %c0_18 = arith.constant 0 : index
    %21 = vector.load %arg8[%c0_17, %c0_18] : memref<9x8xf32, #tpu.memory_space<vmem>>, vector<9x8xf32>
    %22 = vector.shape_cast %21 : vector<9x8xf32> to vector<1x9x8xf32>
    %c0_19 = arith.constant 0 : index
    %c0_20 = arith.constant 0 : index
    %c0_21 = arith.constant 0 : index
    %23 = vector.load %arg3[%c0_19, %c0_20, %c0_21] : memref<1x8x256xf32, #tpu.memory_space<vmem>>, vector<1x8x256xf32>
    "tpu.trace_start"() <{level = 10 : i32, message = "btc,bcp->btp"}> : () -> ()
    %cst_22 = arith.constant dense<0.000000e+00> : vector<1x9x256xf32>
    %24 = tpu.matmul %22, %23, %cst_22 {dimension_numbers = #tpu.dot_dimension_numbers<[2], [1], [1], [2], [0, 0, 0, 1, 1, 2], [0], [0]>} : vector<1x9x8xf32>, vector<1x8x256xf32>, vector<1x9x256xf32> -> vector<1x9x256xf32>
    %cst_23 = arith.constant 0.000000e+00 : f32
    "tpu.trace_stop"() : () -> ()
    %25 = vector.broadcast %cst_23 : f32 to vector<1x256xf32>
    %26 = vector.extract_strided_slice %24 {offsets = [0, 0, 0], sizes = [1, 1, 256], strides = [1, 1, 1]} : vector<1x9x256xf32> to vector<1x1x256xf32>
    %27 = vector.shape_cast %26 : vector<1x1x256xf32> to vector<1x256xf32>
    %c17_i32 = arith.constant 17 : i32
    %28 = tpu.dynamic_rotate %27 by %c17_i32 dim 1 : vector<1x256xf32>, i32 -> vector<1x256xf32>
    %c0_24 = arith.constant 0 : index
    %c0_25 = arith.constant 0 : index
    %29 = vector.load %arg9[%c0_24, %c0_25] : memref<9x256xf32, #tpu.memory_space<vmem>>, vector<1x256xf32>
    %30 = arith.mulf %28, %29 : vector<1x256xf32>
    %31 = arith.addf %25, %30 : vector<1x256xf32>
    %32 = vector.extract_strided_slice %24 {offsets = [0, 1, 0], sizes = [1, 1, 256], strides = [1, 1, 1]} : vector<1x9x256xf32> to vector<1x1x256xf32>
    %33 = vector.shape_cast %32 : vector<1x1x256xf32> to vector<1x256xf32>
    %c16_i32 = arith.constant 16 : i32
    %34 = tpu.dynamic_rotate %33 by %c16_i32 dim 1 : vector<1x256xf32>, i32 -> vector<1x256xf32>
    %c1 = arith.constant 1 : index
    %c0_26 = arith.constant 0 : index
    %35 = vector.load %arg9[%c1, %c0_26] : memref<9x256xf32, #tpu.memory_space<vmem>>, vector<1x256xf32>
    %36 = arith.mulf %34, %35 : vector<1x256xf32>
    %37 = arith.addf %31, %36 : vector<1x256xf32>
    %38 = vector.extract_strided_slice %24 {offsets = [0, 2, 0], sizes = [1, 1, 256], strides = [1, 1, 1]} : vector<1x9x256xf32> to vector<1x1x256xf32>
    %39 = vector.shape_cast %38 : vector<1x1x256xf32> to vector<1x256xf32>
    %c15_i32 = arith.constant 15 : i32
    %40 = tpu.dynamic_rotate %39 by %c15_i32 dim 1 : vector<1x256xf32>, i32 -> vector<1x256xf32>
    %c2 = arith.constant 2 : index
    %c0_27 = arith.constant 0 : index
    %41 = vector.load %arg9[%c2, %c0_27] : memref<9x256xf32, #tpu.memory_space<vmem>>, vector<1x256xf32>
    %42 = arith.mulf %40, %41 : vector<1x256xf32>
    %43 = arith.addf %37, %42 : vector<1x256xf32>
    %44 = vector.extract_strided_slice %24 {offsets = [0, 3, 0], sizes = [1, 1, 256], strides = [1, 1, 1]} : vector<1x9x256xf32> to vector<1x1x256xf32>
    %45 = vector.shape_cast %44 : vector<1x1x256xf32> to vector<1x256xf32>
    %c1_i32 = arith.constant 1 : i32
    %46 = tpu.dynamic_rotate %45 by %c1_i32 dim 1 : vector<1x256xf32>, i32 -> vector<1x256xf32>
    %c3 = arith.constant 3 : index
    %c0_28 = arith.constant 0 : index
    %47 = vector.load %arg9[%c3, %c0_28] : memref<9x256xf32, #tpu.memory_space<vmem>>, vector<1x256xf32>
    %48 = arith.mulf %46, %47 : vector<1x256xf32>
    %49 = arith.addf %43, %48 : vector<1x256xf32>
    %50 = vector.extract_strided_slice %24 {offsets = [0, 4, 0], sizes = [1, 1, 256], strides = [1, 1, 1]} : vector<1x9x256xf32> to vector<1x1x256xf32>
    %51 = vector.shape_cast %50 : vector<1x1x256xf32> to vector<1x256xf32>
    %c4 = arith.constant 4 : index
    %c0_29 = arith.constant 0 : index
    %52 = vector.load %arg9[%c4, %c0_29] : memref<9x256xf32, #tpu.memory_space<vmem>>, vector<1x256xf32>
    %53 = arith.mulf %51, %52 : vector<1x256xf32>
    %54 = arith.addf %49, %53 : vector<1x256xf32>
    %55 = vector.extract_strided_slice %24 {offsets = [0, 5, 0], sizes = [1, 1, 256], strides = [1, 1, 1]} : vector<1x9x256xf32> to vector<1x1x256xf32>
    %56 = vector.shape_cast %55 : vector<1x1x256xf32> to vector<1x256xf32>
    %c255_i32 = arith.constant 255 : i32
    %57 = tpu.dynamic_rotate %56 by %c255_i32 dim 1 : vector<1x256xf32>, i32 -> vector<1x256xf32>
    %c5 = arith.constant 5 : index
    %c0_30 = arith.constant 0 : index
    %58 = vector.load %arg9[%c5, %c0_30] : memref<9x256xf32, #tpu.memory_space<vmem>>, vector<1x256xf32>
    %59 = arith.mulf %57, %58 : vector<1x256xf32>
    %60 = arith.addf %54, %59 : vector<1x256xf32>
    %61 = vector.extract_strided_slice %24 {offsets = [0, 6, 0], sizes = [1, 1, 256], strides = [1, 1, 1]} : vector<1x9x256xf32> to vector<1x1x256xf32>
    %62 = vector.shape_cast %61 : vector<1x1x256xf32> to vector<1x256xf32>
    %c241_i32 = arith.constant 241 : i32
    %63 = tpu.dynamic_rotate %62 by %c241_i32 dim 1 : vector<1x256xf32>, i32 -> vector<1x256xf32>
    %c6 = arith.constant 6 : index
    %c0_31 = arith.constant 0 : index
    %64 = vector.load %arg9[%c6, %c0_31] : memref<9x256xf32, #tpu.memory_space<vmem>>, vector<1x256xf32>
    %65 = arith.mulf %63, %64 : vector<1x256xf32>
    %66 = arith.addf %60, %65 : vector<1x256xf32>
    %67 = vector.extract_strided_slice %24 {offsets = [0, 7, 0], sizes = [1, 1, 256], strides = [1, 1, 1]} : vector<1x9x256xf32> to vector<1x1x256xf32>
    %68 = vector.shape_cast %67 : vector<1x1x256xf32> to vector<1x256xf32>
    %c240_i32 = arith.constant 240 : i32
    %69 = tpu.dynamic_rotate %68 by %c240_i32 dim 1 : vector<1x256xf32>, i32 -> vector<1x256xf32>
    %c7 = arith.constant 7 : index
    %c0_32 = arith.constant 0 : index
    %70 = vector.load %arg9[%c7, %c0_32] : memref<9x256xf32, #tpu.memory_space<vmem>>, vector<1x256xf32>
    %71 = arith.mulf %69, %70 : vector<1x256xf32>
    %72 = arith.addf %66, %71 : vector<1x256xf32>
    %73 = vector.extract_strided_slice %24 {offsets = [0, 8, 0], sizes = [1, 1, 256], strides = [1, 1, 1]} : vector<1x9x256xf32> to vector<1x1x256xf32>
    %74 = vector.shape_cast %73 : vector<1x1x256xf32> to vector<1x256xf32>
    %c239_i32 = arith.constant 239 : i32
    %75 = tpu.dynamic_rotate %74 by %c239_i32 dim 1 : vector<1x256xf32>, i32 -> vector<1x256xf32>
    %c8 = arith.constant 8 : index
    %c0_33 = arith.constant 0 : index
    %76 = vector.load %arg9[%c8, %c0_33] : memref<9x256xf32, #tpu.memory_space<vmem>>, vector<1x256xf32>
    %77 = arith.mulf %75, %76 : vector<1x256xf32>
    %78 = arith.addf %72, %77 : vector<1x256xf32>
    %c0_34 = arith.constant 0 : index
    %79 = memref.load %arg2[%c0_34] : memref<1xf32, #tpu.memory_space<smem>>
    %80 = vector.broadcast %79 : f32 to vector<1x256xf32>
    %81 = arith.addf %78, %80 : vector<1x256xf32>
    %cst_35 = arith.constant 5.000000e-01 : f32
    %82 = vector.broadcast %cst_35 : f32 to vector<1x256xf32>
    %83 = arith.mulf %82, %81 : vector<1x256xf32>
    %84 = math.tanh %83 : vector<1x256xf32>
    %cst_36 = arith.constant 1.000000e+00 : f32
    %85 = vector.broadcast %cst_36 : f32 to vector<1x256xf32>
    %86 = arith.addf %84, %85 : vector<1x256xf32>
    %cst_37 = arith.constant 5.000000e-01 : f32
    %87 = vector.broadcast %cst_37 : f32 to vector<1x256xf32>
    %88 = arith.mulf %87, %86 : vector<1x256xf32>
    %c0_38 = arith.constant 0 : index
    %89 = memref.load %arg1[%c0_38] : memref<2xf32, #tpu.memory_space<smem>>
    %90 = vector.shape_cast %20 : vector<1x8xf32> to vector<1x8x1xf32>
    %91 = vector.broadcast %89 : f32 to vector<1x8x1xf32>
    %92 = arith.mulf %91, %90 : vector<1x8x1xf32>
    %c1_39 = arith.constant 1 : index
    %93 = memref.load %arg1[%c1_39] : memref<2xf32, #tpu.memory_space<smem>>
    %94 = vector.shape_cast %88 : vector<1x256xf32> to vector<1x1x256xf32>
    %95 = vector.broadcast %93 : f32 to vector<1x1x256xf32>
    %96 = arith.mulf %95, %94 : vector<1x1x256xf32>
    %97 = vector.broadcast %92 : vector<1x8x1xf32> to vector<1x8x256xf32>
    %98 = vector.broadcast %96 : vector<1x1x256xf32> to vector<1x8x256xf32>
    %99 = arith.addf %97, %98 : vector<1x8x256xf32>
    %c0_40 = arith.constant 0 : index
    %c0_41 = arith.constant 0 : index
    %c0_42 = arith.constant 0 : index
    %100 = vector.load %arg3[%c0_40, %c0_41, %c0_42] : memref<1x8x256xf32, #tpu.memory_space<vmem>>, vector<1x8x256xf32>
    %101 = arith.mulf %99, %100 : vector<1x8x256xf32>
    %c0_43 = arith.constant 0 : index
    %c0_44 = arith.constant 0 : index
    %c0_45 = arith.constant 0 : index
    %102 = vector.load %arg10[%c0_43, %c0_44, %c0_45] : memref<1x8x256xf32, #tpu.memory_space<vmem>>, vector<1x8x256xf32>
    tpu.vector_store %arg10[%c0_43, %c0_44, %c0_45], %101 {strides = array<i32>} : memref<1x8x256xf32, #tpu.memory_space<vmem>>, vector<1x8x256xf32>,
    return
  }
  func.func @transform_0(%arg0: i32) -> i32 {
    %c0_i32 = arith.constant 0 : i32
    %c0_i32_0 = arith.constant 0 : i32
    return %c0_i32 : i32
  }
  func.func @transform_1(%arg0: i32) -> i32 {
    %c0_i32 = arith.constant 0 : i32
    %c0_i32_0 = arith.constant 0 : i32
    return %c0_i32 : i32
  }
  func.func @transform_2(%arg0: i32) -> (i32, i32, i32) {
    %c0_i32 = arith.constant 0 : i32
    %c0_i32_0 = arith.constant 0 : i32
    %c0_i32_1 = arith.constant 0 : i32
    return %arg0, %c0_i32, %c0_i32_0 : i32, i32, i32
  }
  func.func @transform_3(%arg0: i32) -> (i32, i32) {
    %c0_i32 = arith.constant 0 : i32
    %c0_i32_0 = arith.constant 0 : i32
    %c0_i32_1 = arith.constant 0 : i32
    return %c0_i32, %c0_i32_0 : i32, i32
  }
  func.func @transform_4(%arg0: i32) -> (i32, i32) {
    %c0_i32 = arith.constant 0 : i32
    %c0_i32_0 = arith.constant 0 : i32
    %c0_i32_1 = arith.constant 0 : i32
    return %c0_i32, %c0_i32_0 : i32, i32
  }
  func.func @transform_5(%arg0: i32) -> (i32, i32) {
    %c0_i32 = arith.constant 0 : i32
    %c0_i32_0 = arith.constant 0 : i32
    %c0_i32_1 = arith.constant 0 : i32
    return %c0_i32, %c0_i32_0 : i32, i32
  }
  func.func @transform_6(%arg0: i32) -> (i32, i32) {
    %c0_i32 = arith.constant 0 : i32
    %c0_i32_0 = arith.constant 0 : i32
    %c0_i32_1 = arith.constant 0 : i32
    return %c0_i32, %c0_i32_0 : i32, i32
  }
  func.func @transform_7(%arg0: i32) -> (i32, i32) {
    %c0_i32 = arith.constant 0 : i32
    %c0_i32_0 = arith.constant 0 : i32
    %c0_i32_1 = arith.constant 0 : i32
    return %c0_i32, %c0_i32_0 : i32, i32
  }
  func.func @transform_8(%arg0: i32) -> (i32, i32) {
    %c0_i32 = arith.constant 0 : i32
    %c0_i32_0 = arith.constant 0 : i32
    %c0_i32_1 = arith.constant 0 : i32
    return %c0_i32, %c0_i32_0 : i32, i32
  }
  func.func @transform_9(%arg0: i32) -> (i32, i32, i32) {
    %c0_i32 = arith.constant 0 : i32
    %c0_i32_0 = arith.constant 0 : i32
    %c0_i32_1 = arith.constant 0 : i32
    return %arg0, %c0_i32, %c0_i32_0 : i32, i32, i32
  }
}

</mosaic_0001>

<llo_original>
// kernel: tpu_custom_call.1
$region0: #{tpu_custom_call.1}
  #allocation0 [shape = 'u32[]', space=smem, size = 0x4, offset = 0x4, fixed_abs, tag = 'smem constant byte address 0x4 - core index']
  #allocation1 [shape = 'u32[72,128]{1,0:T(1,128)}', space=vmem, size = 0x9000, scoped, tag = 'internal scratch']
  #allocation2 [shape = 'f32[1]{0:T(128)S(6)}', space=smem, size = 0x200, scoped, tag = 'scoped memory for tpu_custom_call.1']
  %s0 = inlined_call_operand.vmem [shape: f32[2], index: 0, kind: input, shape index: {}]
  %s1 = inlined_call_operand.<no memory space> [shape: f32[1], index: 1, kind: input, shape index: {}]
  %s2 = inlined_call_operand.hbm [shape: f32[2,8,256], index: 2, kind: input, shape index: {}]
  %s3 = inlined_call_operand.vmem [shape: f32[8,2], index: 3, kind: input, shape index: {}]
  %s4 = inlined_call_operand.vmem [shape: f32[1,2], index: 4, kind: input, shape index: {}]
  %s5 = inlined_call_operand.vmem [shape: f32[2,8], index: 5, kind: input, shape index: {}]
  %s6 = inlined_call_operand.vmem [shape: f32[1,8], index: 6, kind: input, shape index: {}]
  %s7 = inlined_call_operand.vmem [shape: f32[9,8], index: 7, kind: input, shape index: {}]
  %s8 = inlined_call_operand.hbm [shape: f32[9,256], index: 8, kind: input, shape index: {}]
  %s9 = inlined_call_operand.hbm [shape: f32[2,8,256], index: 9, kind: output, shape index: {}]
  %s10 = sld [smem:[#allocation0]]
  $region81: #{tpu_custom_call.1} parent=0
    _
  %s12 = ssub.s32 1, %s10
  %s13 = scalar_select 0, %s12, %s10
  %14 = sst [smem:[#allocation2]] %s1
  $region1: #{tpu_custom_call.1} parent=0
    #allocation3 [shape = 'u8[512]{0}', space=smem, size = 0x200, scoped, tag = 'input window, operand 0, single buffered']
    #allocation4 [shape = 's32[2]{0}', space=sflag, size = 0x8, scoped, tag = 'scoped memory for tpu_custom_call.1']
    #allocation5 [shape = 's32[2]{0}', space=sflag, size = 0x8, scoped, tag = 'scoped memory for tpu_custom_call.1']
    #allocation6 [shape = 's32[2]{0}', space=sflag, size = 0x8, scoped, tag = 'scoped memory for tpu_custom_call.1']
    #allocation7 [shape = 'u8[16384]{0}', space=vmem, size = 0x4000, scoped, tag = 'input window, operand 2']
    #allocation8 [shape = 'u8[16384]{0}', space=vmem, size = 0x4000, scoped, tag = 'input window, operand 8, single buffered']
    #allocation9 [shape = 's32[1]{0}', space=sflag, size = 0x4, scoped, tag = 'scoped memory for tpu_custom_call.1']
    #allocation10 [shape = 'u8[16384]{0}', space=vmem, size = 0x4000, scoped, tag = 'output window, operand 0']
    %15 = vsyncpa [#allocation6], 0
    %16 = vsyncpa [#allocation4], 0
    %s17 = scalar_lea.sflag [#allocation4], 1
    %18 = vsyncpa %s17, 0
    %19 = vsyncpa [#allocation9], 0
    %20 = vsyncpa [#allocation5], 0
    %s21 = scalar_lea.sflag [#allocation5], 1
    %22 = vsyncpa %s21, 0
    loop: start=0, step=1, limit=4
    $region2: #{tpu_custom_call.1} parent=1 // loop_pre_header
      _
    $region3: #{tpu_custom_call.1} parent=1 // loop_header
      %s24 = sphi 0, %s28
      %p25 = scmp.ge.s32.totalorder %s24, 4
      %s32 = sphi 0, %s32
      %s34 = sphi 0, %s32
      %s35 = sphi 0, %s34
      %s49 = sphi 0, %s35
      %s53 = sphi 0, %s53
      %s55 = sphi 0, %s53
      %s56 = sphi 0, %s55
      %s70 = sphi 0, %s56
      %s76 = sphi 0, %s78
      %s79 = sphi 0, %s76
      %s80 = sphi 0, %s79
      %s96 = sphi 0, %s80
      %s100 = sphi 0, %s100
      %s102 = sphi 0, %s100
      %s103 = sphi 0, %s102
      %s117 = sphi 0, %s103
      %s121 = sphi 0, %s121
      %s123 = sphi 0, %s121
      %s124 = sphi 0, %s123
      %s138 = sphi 0, %s124
      %s142 = sphi 0, %s142
      %s144 = sphi 0, %s142
      %s145 = sphi 0, %s144
      %s159 = sphi 0, %s145
      %s163 = sphi 0, %s163
      %s165 = sphi 0, %s163
      %s166 = sphi 0, %s165
      %s180 = sphi 0, %s166
      %s184 = sphi 0, %s184
      %s186 = sphi 0, %s184
      %s187 = sphi 0, %s186
      %s201 = sphi 0, %s187
      %s205 = sphi 0, %s205
      %s207 = sphi 0, %s205
      %s208 = sphi 0, %s207
      %s222 = sphi 0, %s208
      %s228 = sphi 0, %s230
      %s231 = sphi 0, %s228
      %s232 = sphi 0, %s231
      %s248 = sphi 0, %s232
    $region4: #{tpu_custom_call.1} parent=1 // loop_header_branch
      %27 = sbr.rel (%p25) target = $region8
    $region5: #{tpu_custom_call.1} parent=1 // loop_body
      %s29 = ssub.s32 %s24, 1
      %s30 = ssub.s32 %s24, 2
      %s31 = sadd.s32 %s24, 1
      %s33 = sadd.s32 %s32, 1
      %p36 = scmp.eq.s32.totalorder %s24, 1
      %p37 = scmp.ne.s32.totalorder %s32, %s34
      %p38 = scmp.eq.s32.totalorder %s24, 0
      %p39 = por %p37, %p38
      %p40 = scmp.ne.s32.totalorder %s32, %s34
      %p41 = scmp.eq.s32.totalorder %s29, 1
      %p42 = por %p40, %p41
      %p43 = scmp.ne.s32.totalorder %s34, %s35
      %p44 = scmp.eq.s32.totalorder %s29, 0
      %p45 = por %p43, %p44
      %p46 = scmp.ne.s32.totalorder %s34, %s35
      %p47 = scmp.eq.s32.totalorder %s30, 1
      %p48 = por %p46, %p47
      %p50 = scmp.ne.s32.totalorder %s35, %s49
      %p51 = scmp.eq.s32.totalorder %s30, 0
      %p52 = por %p50, %p51
      %s54 = sadd.s32 %s53, 1
      %p57 = scmp.eq.s32.totalorder %s24, 1
      %p58 = scmp.ne.s32.totalorder %s53, %s55
      %p59 = scmp.eq.s32.totalorder %s24, 0
      %p60 = por %p58, %p59
      %p61 = scmp.ne.s32.totalorder %s53, %s55
      %p62 = scmp.eq.s32.totalorder %s29, 1
      %p63 = por %p61, %p62
      %p64 = scmp.ne.s32.totalorder %s55, %s56
      %p65 = scmp.eq.s32.totalorder %s29, 0
      %p66 = por %p64, %p65
      %p67 = scmp.ne.s32.totalorder %s55, %s56
      %p68 = scmp.eq.s32.totalorder %s30, 1
      %p69 = por %p67, %p68
      %p71 = scmp.ne.s32.totalorder %s56, %s70
      %p72 = scmp.eq.s32.totalorder %s30, 0
      %p73 = por %p71, %p72
      %s74 = ssub.s32 %s24, %s31
      %p75 = scmp.eq.s32.totalorder %s74, 0
      %s77 = sadd.s32 %s76, 1
      %s78 = scalar_select %p75, %s76, %s77
      %p81 = pneg %p75
      %p82 = scmp.eq.s32.totalorder %s24, 1
      %p83 = por %p81, %p82
      %p84 = scmp.ne.s32.totalorder %s76, %s79
      %p85 = scmp.eq.s32.totalorder %s24, 0
      %p86 = por %p84, %p85
      %p87 = scmp.ne.s32.totalorder %s76, %s79
      %p88 = scmp.eq.s32.totalorder %s29, 1
      %p89 = por %p87, %p88
      %p90 = scmp.ne.s32.totalorder %s79, %s80
      %p91 = scmp.eq.s32.totalorder %s29, 0
      %p92 = por %p90, %p91
      %p93 = scmp.ne.s32.totalorder %s79, %s80
      %p94 = scmp.eq.s32.totalorder %s30, 1
      %p95 = por %p93, %p94
      %p97 = scmp.ne.s32.totalorder %s80, %s96
      %p98 = scmp.eq.s32.totalorder %s30, 0
      %p99 = por %p97, %p98
      %s101 = sadd.s32 %s100, 1
      %p104 = scmp.eq.s32.totalorder %s24, 1
      %p105 = scmp.ne.s32.totalorder %s100, %s102
      %p106 = scmp.eq.s32.totalorder %s24, 0
      %p107 = por %p105, %p106
      %p108 = scmp.ne.s32.totalorder %s100, %s102
      %p109 = scmp.eq.s32.totalorder %s29, 1
      %p110 = por %p108, %p109
      %p111 = scmp.ne.s32.totalorder %s102, %s103
      %p112 = scmp.eq.s32.totalorder %s29, 0
      %p113 = por %p111, %p112
      %p114 = scmp.ne.s32.totalorder %s102, %s103
      %p115 = scmp.eq.s32.totalorder %s30, 1
      %p116 = por %p114, %p115
      %p118 = scmp.ne.s32.totalorder %s103, %s117
      %p119 = scmp.eq.s32.totalorder %s30, 0
      %p120 = por %p118, %p119
      %s122 = sadd.s32 %s121, 1
      %p125 = scmp.eq.s32.totalorder %s24, 1
      %p126 = scmp.ne.s32.totalorder %s121, %s123
      %p127 = scmp.eq.s32.totalorder %s24, 0
      %p128 = por %p126, %p127
      %p129 = scmp.ne.s32.totalorder %s121, %s123
      %p130 = scmp.eq.s32.totalorder %s29, 1
      %p131 = por %p129, %p130
      %p132 = scmp.ne.s32.totalorder %s123, %s124
      %p133 = scmp.eq.s32.totalorder %s29, 0
      %p134 = por %p132, %p133
      %p135 = scmp.ne.s32.totalorder %s123, %s124
      %p136 = scmp.eq.s32.totalorder %s30, 1
      %p137 = por %p135, %p136
      %p139 = scmp.ne.s32.totalorder %s124, %s138
      %p140 = scmp.eq.s32.totalorder %s30, 0
      %p141 = por %p139, %p140
      %s143 = sadd.s32 %s142, 1
      %p146 = scmp.eq.s32.totalorder %s24, 1
      %p147 = scmp.ne.s32.totalorder %s142, %s144
      %p148 = scmp.eq.s32.totalorder %s24, 0
      %p149 = por %p147, %p148
      %p150 = scmp.ne.s32.totalorder %s142, %s144
      %p151 = scmp.eq.s32.totalorder %s29, 1
      %p152 = por %p150, %p151
      %p153 = scmp.ne.s32.totalorder %s144, %s145
      %p154 = scmp.eq.s32.totalorder %s29, 0
      %p155 = por %p153, %p154
      %p156 = scmp.ne.s32.totalorder %s144, %s145
      %p157 = scmp.eq.s32.totalorder %s30, 1
      %p158 = por %p156, %p157
      %p160 = scmp.ne.s32.totalorder %s145, %s159
      %p161 = scmp.eq.s32.totalorder %s30, 0
      %p162 = por %p160, %p161
      %s164 = sadd.s32 %s163, 1
      %p167 = scmp.eq.s32.totalorder %s24, 1
      %p168 = scmp.ne.s32.totalorder %s163, %s165
      %p169 = scmp.eq.s32.totalorder %s24, 0
      %p170 = por %p168, %p169
      %p171 = scmp.ne.s32.totalorder %s163, %s165
      %p172 = scmp.eq.s32.totalorder %s29, 1
      %p173 = por %p171, %p172
      %p174 = scmp.ne.s32.totalorder %s165, %s166
      %p175 = scmp.eq.s32.totalorder %s29, 0
      %p176 = por %p174, %p175
      %p177 = scmp.ne.s32.totalorder %s165, %s166
      %p178 = scmp.eq.s32.totalorder %s30, 1
      %p179 = por %p177, %p178
      %p181 = scmp.ne.s32.totalorder %s166, %s180
      %p182 = scmp.eq.s32.totalorder %s30, 0
      %p183 = por %p181, %p182
      %s185 = sadd.s32 %s184, 1
      %p188 = scmp.eq.s32.totalorder %s24, 1
      %p189 = scmp.ne.s32.totalorder %s184, %s186
      %p190 = scmp.eq.s32.totalorder %s24, 0
      %p191 = por %p189, %p190
      %p192 = scmp.ne.s32.totalorder %s184, %s186
      %p193 = scmp.eq.s32.totalorder %s29, 1
      %p194 = por %p192, %p193
      %p195 = scmp.ne.s32.totalorder %s186, %s187
      %p196 = scmp.eq.s32.totalorder %s29, 0
      %p197 = por %p195, %p196
      %p198 = scmp.ne.s32.totalorder %s186, %s187
      %p199 = scmp.eq.s32.totalorder %s30, 1
      %p200 = por %p198, %p199
      %p202 = scmp.ne.s32.totalorder %s187, %s201
      %p203 = scmp.eq.s32.totalorder %s30, 0
      %p204 = por %p202, %p203
      %s206 = sadd.s32 %s205, 1
      %p209 = scmp.eq.s32.totalorder %s24, 1
      %p210 = scmp.ne.s32.totalorder %s205, %s207
      %p211 = scmp.eq.s32.totalorder %s24, 0
      %p212 = por %p210, %p211
      %p213 = scmp.ne.s32.totalorder %s205, %s207
      %p214 = scmp.eq.s32.totalorder %s29, 1
      %p215 = por %p213, %p214
      %p216 = scmp.ne.s32.totalorder %s207, %s208
      %p217 = scmp.eq.s32.totalorder %s29, 0
      %p218 = por %p216, %p217
      %p219 = scmp.ne.s32.totalorder %s207, %s208
      %p220 = scmp.eq.s32.totalorder %s30, 1
      %p221 = por %p219, %p220
      %p223 = scmp.ne.s32.totalorder %s208, %s222
      %p224 = scmp.eq.s32.totalorder %s30, 0
      %p225 = por %p223, %p224
      %s226 = ssub.s32 %s24, %s31
      %p227 = scmp.eq.s32.totalorder %s226, 0
      %s229 = sadd.s32 %s228, 1
      %s230 = scalar_select %p227, %s228, %s229
      %p233 = pneg %p227
      %p234 = scmp.eq.s32.totalorder %s24, 1
      %p235 = por %p233, %p234
      %p236 = scmp.ne.s32.totalorder %s228, %s231
      %p237 = scmp.eq.s32.totalorder %s24, 0
      %p238 = por %p236, %p237
      %p239 = scmp.ne.s32.totalorder %s228, %s231
      %p240 = scmp.eq.s32.totalorder %s29, 1
      %p241 = por %p239, %p240
      %p242 = scmp.ne.s32.totalorder %s231, %s232
      %p243 = scmp.eq.s32.totalorder %s29, 0
      %p244 = por %p242, %p243
      %p245 = scmp.ne.s32.totalorder %s231, %s232
      %p246 = scmp.eq.s32.totalorder %s30, 1
      %p247 = por %p245, %p246
      %p249 = scmp.ne.s32.totalorder %s232, %s248
      %p250 = scmp.eq.s32.totalorder %s30, 0
      %p251 = por %p249, %p250
      %p252 = scmp.le.s32.totalorder 1, %s24
      %p253 = scmp.lt.s32.totalorder %s24, 3
      %p254 = pnand %p252, %p253
      %p255 = pneg %p254
      // Predicated region
      $region9: #{tpu_custom_call.1} parent=5 // pred_check
        _
      $region10: #{tpu_custom_call.1} parent=5 // pred_check_branch
        %257 = sbr.rel (%p254) target = $region12
      $region11: #{tpu_custom_call.1} parent=5 // pred_region
        %s258 = ssub.s32 %s24, 1
        // Predicated region
        $region13: #{tpu_custom_call.1} parent=11 // pred_check
          %p259 = pneg %p45
        $region14: #{tpu_custom_call.1} parent=11 // pred_check_branch
          %261 = sbr.rel (%p259) target = $region16
        $region15: #{tpu_custom_call.1} parent=11 // pred_region
          %263 = vsyncadd [#allocation6], 0
          %s265 = sshll.u32 %s0, 4
          %s266 = int_to_ptr.vmem [resolvable:$true] %s265
          %268 = dma.vmem_to_smem %s266, 16, [#allocation3], [#allocation6]
        $region16: #{tpu_custom_call.1} parent=11 // pred_fallthru
          _
        // Predicated region
        $region17: #{tpu_custom_call.1} parent=11 // pred_check
          %p269 = pneg %p66
        $region18: #{tpu_custom_call.1} parent=11 // pred_check_branch
          %271 = sbr.rel (%p269) target = $region20
        $region19: #{tpu_custom_call.1} parent=11 // pred_region
          _
        $region20: #{tpu_custom_call.1} parent=11 // pred_fallthru
          _
        // Predicated region
        $region21: #{tpu_custom_call.1} parent=11 // pred_check
          %p272 = pneg %p113
        $region22: #{tpu_custom_call.1} parent=11 // pred_check_branch
          %274 = sbr.rel (%p272) target = $region24
        $region23: #{tpu_custom_call.1} parent=11 // pred_region
          _
        $region24: #{tpu_custom_call.1} parent=11 // pred_fallthru
          _
        // Predicated region
        $region25: #{tpu_custom_call.1} parent=11 // pred_check
          %p275 = pneg %p134
        $region26: #{tpu_custom_call.1} parent=11 // pred_check_branch
          %277 = sbr.rel (%p275) target = $region28
        $region27: #{tpu_custom_call.1} parent=11 // pred_region
          _
        $region28: #{tpu_custom_call.1} parent=11 // pred_fallthru
          _
        // Predicated region
        $region29: #{tpu_custom_call.1} parent=11 // pred_check
          %p278 = pneg %p155
        $region30: #{tpu_custom_call.1} parent=11 // pred_check_branch
          %280 = sbr.rel (%p278) target = $region32
        $region31: #{tpu_custom_call.1} parent=11 // pred_region
          _
        $region32: #{tpu_custom_call.1} parent=11 // pred_fallthru
          _
        // Predicated region
        $region33: #{tpu_custom_call.1} parent=11 // pred_check
          %p281 = pneg %p176
        $region34: #{tpu_custom_call.1} parent=11 // pred_check_branch
          %283 = sbr.rel (%p281) target = $region36
        $region35: #{tpu_custom_call.1} parent=11 // pred_region
          _
        $region36: #{tpu_custom_call.1} parent=11 // pred_fallthru
          _
        // Predicated region
        $region37: #{tpu_custom_call.1} parent=11 // pred_check
          %p284 = pneg %p197
        $region38: #{tpu_custom_call.1} parent=11 // pred_check_branch
          %286 = sbr.rel (%p284) target = $region40
        $region39: #{tpu_custom_call.1} parent=11 // pred_region
          _
        $region40: #{tpu_custom_call.1} parent=11 // pred_fallthru
          _
        // Predicated region
        $region41: #{tpu_custom_call.1} parent=11 // pred_check
          %p287 = pneg %p218
        $region42: #{tpu_custom_call.1} parent=11 // pred_check_branch
          %289 = sbr.rel (%p287) target = $region44
        $region43: #{tpu_custom_call.1} parent=11 // pred_region
          %291 = vsyncadd [#allocation9], 0
          %s292 = sshll.u32 %s8, 4
          %s293 = int_to_ptr.hbm [resolvable:$true] %s292
          %s294 = sshll.u32 [#allocation8], 4
          %s295 = int_to_ptr.vmem [resolvable:$true] %s294
          %300 = dma.hbm_to_vmem [thread:$0]  %s293, 512, %s295, [#allocation9], 256, 256, 16
        $region44: #{tpu_custom_call.1} parent=11 // pred_fallthru
          _
      $region12: #{tpu_custom_call.1} parent=5 // pred_fallthru
        _
      %p301 = scmp.lt.s32.totalorder %s24, 2
      // Predicated region
      $region45: #{tpu_custom_call.1} parent=5 // pred_check
        %p302 = pneg %p301
      $region46: #{tpu_custom_call.1} parent=5 // pred_check_branch
        %304 = sbr.rel (%p302) target = $region48
      $region47: #{tpu_custom_call.1} parent=5 // pred_region
        // Predicated region
        $region49: #{tpu_custom_call.1} parent=47 // pred_check
          %p305 = pneg %p86
        $region50: #{tpu_custom_call.1} parent=47 // pred_check_branch
          %307 = sbr.rel (%p305) target = $region52
        $region51: #{tpu_custom_call.1} parent=47 // pred_region
          %s308 = sand.u32 %s76, 1
          %s309 = scalar_lea.sflag [#allocation4], %s308
          %s310 = sand.u32 %s76, 1
          %s311 = smul.addr %s310, 16
          %s312 = scalar_lea.vmem [#allocation7], %s311
          %314 = vsyncadd %s309, 0
          %s315 = smul.addr %s24, 2
          %s316 = smul.addr %s315, 8
          %s317 = scalar_lea.hbm %s2, %s316
          %s319 = sshll.u32 %s317, 4
          %s320 = int_to_ptr.hbm [resolvable:$true] %s319
          %s321 = sshll.u32 %s312, 4
          %s322 = int_to_ptr.vmem [resolvable:$true] %s321
          %324 = dma.hbm_to_vmem [thread:$0]  %s320, 256, %s322, %s309
        $region52: #{tpu_custom_call.1} parent=47 // pred_fallthru
          _
      $region48: #{tpu_custom_call.1} parent=5 // pred_fallthru
        _
      %p325 = scmp.le.s32.totalorder 1, %s24
      %p326 = scmp.lt.s32.totalorder %s24, 3
      %p327 = pnand %p325, %p326
      %p328 = pneg %p327
      // Predicated region
      $region53: #{tpu_custom_call.1} parent=5 // pred_check
        _
      $region54: #{tpu_custom_call.1} parent=5 // pred_check_branch
        %330 = sbr.rel (%p327) target = $region56
      $region55: #{tpu_custom_call.1} parent=5 // pred_region
        %s331 = ssub.s32 %s24, 1
        // Predicated region
        $region57: #{tpu_custom_call.1} parent=55 // pred_check
          %p332 = pneg %p45
        $region58: #{tpu_custom_call.1} parent=55 // pred_check_branch
          %334 = sbr.rel (%p332) target = $region60
        $region59: #{tpu_custom_call.1} parent=55 // pred_region
          %336 = dma.done [#allocation6], 16
        $region60: #{tpu_custom_call.1} parent=55 // pred_fallthru
          _
        %s337 = sand.u32 %s79, 1
        %s338 = scalar_lea.sflag [#allocation4], %s337
        %s339 = sand.u32 %s79, 1
        %s340 = smul.addr %s339, 16
        %s341 = scalar_lea.vmem [#allocation7], %s340
        // Predicated region
        $region61: #{tpu_custom_call.1} parent=55 // pred_check
          %p342 = pneg %p92
        $region62: #{tpu_custom_call.1} parent=55 // pred_check_branch
          %344 = sbr.rel (%p342) target = $region64
        $region63: #{tpu_custom_call.1} parent=55 // pred_region
          %346 = dma.done %s338, 256
        $region64: #{tpu_custom_call.1} parent=55 // pred_fallthru
          _
        // Predicated region
        $region65: #{tpu_custom_call.1} parent=55 // pred_check
          %p347 = pneg %p218
        $region66: #{tpu_custom_call.1} parent=55 // pred_check_branch
          %349 = sbr.rel (%p347) target = $region68
        $region67: #{tpu_custom_call.1} parent=55 // pred_region
          %351 = dma.done [#allocation9], 512
        $region68: #{tpu_custom_call.1} parent=55 // pred_fallthru
          _
        %352 = sfence
        %p353 = pneg %p45
        %p354 = pneg %p42
        %p355 = pneg %p66
        %p356 = pneg %p63
        %s357 = sand.u32 %s79, 1
        %s358 = scalar_lea.sflag [#allocation4], %s357
        %s359 = sand.u32 %s79, 1
        %s360 = smul.addr %s359, 16
        %s361 = scalar_lea.vmem [#allocation7], %s360
        %p362 = pneg %p92
        %p363 = pneg %p89
        %p364 = pneg %p113
        %p365 = pneg %p110
        %p366 = pneg %p134
        %p367 = pneg %p131
        %p368 = pneg %p155
        %p369 = pneg %p152
        %p370 = pneg %p176
        %p371 = pneg %p173
        %p372 = pneg %p197
        %p373 = pneg %p194
        %p374 = pneg %p218
        %p375 = pneg %p215
        %p376 = pneg %p244
        %p377 = pneg %p241
        %s378 = sand.u32 %s231, 1
        %s379 = scalar_lea.sflag [#allocation5], %s378
        %s380 = sand.u32 %s231, 1
        %s381 = smul.addr %s380, 16
        %s382 = scalar_lea.vmem [#allocation10], %s381
        %v383 = vld [vmem:[%s341] sm:$0xff]
        %v384 = vld [vmem:[%s341 + $0x8] sm:$0xff]
        %v385 = vadd.f32 %v383, %v384
        %386 = vadd.xlane.f32.xlu0 %v385
        %v387 = vpop.xlane.xlu0 %386
        %v388 = vmul.f32 %v387, 0.00390625
        %v389 = vld [vmem:[%s3] sm:$0xff]
        %v390 = vld [vmem:[%s4] sm:$0x1]
        %v392 = vlaneseq
        %v393 = vand.u32 %v392, 127
        %v394 = vperm.slane %v388, %v393
        %vm395 = vcmask 64512
        %v396 = vsel %vm395, %v394, 0
        %398 = vmatpush.msra.mxu0 0.0
        %399 = vmatpush.msra.mxu0 0.0
        %400 = vmatpush.msra.mxu0 0.0
        %401 = vmatpush.msra.mxu0 0.0
        %402 = vmatpush.msra.mxu0 0.0
        %403 = vmatpush.msra.mxu0 0.0
        %404 = vmatpush.msra.mxu0 0.0
        %405 = vmatpush.msra.mxu0 0.0
        %406 = vmatpush.msra.mxu0 0.0
        %407 = vmatpush.msra.mxu0 0.0
        %408 = vmatpush.msra.mxu0 0.0
        %409 = vmatpush.msra.mxu0 0.0
        %410 = vmatpush.msra.mxu0 0.0
        %411 = vmatpush.msra.mxu0 0.0
        %412 = vmatpush.msra.mxu0 0.0
        %413 = vmatpush.msra.mxu0 %v389
        %414 = vmatmul.f32.gmra.mxu0 %v396
        %v415 = vpop.f32.mrf.mxu0
        %v416 = vadd.f32 %v390, %v415
        %417 = vdwg.mxu0
        %v418 = vmax.f32 %v416, 0.0
        %v419 = vld [vmem:[%s5] sm:$0x3]
        %v420 = vld [vmem:[%s6] sm:$0x1]
        %vm421 = vcmask 15360
        %v423 = vsel %vm421, %v418, 0
        %vm425 = vcmask 1041408
        %v427 = vsel %vm425, %v419, 0
        %429 = vmatpush.msra.mxu0 0.0
        %430 = vmatpush.msra.mxu0 0.0
        %431 = vmatpush.msra.mxu0 0.0
        %432 = vmatpush.msra.mxu0 0.0
        %433 = vmatpush.msra.mxu0 0.0
        %434 = vmatpush.msra.mxu0 0.0
        %435 = vmatpush.msra.mxu0 0.0
        %436 = vmatpush.msra.mxu0 0.0
        %437 = vmatpush.msra.mxu0 0.0
        %438 = vmatpush.msra.mxu0 0.0
        %439 = vmatpush.msra.mxu0 0.0
        %440 = vmatpush.msra.mxu0 0.0
        %441 = vmatpush.msra.mxu0 0.0
        %442 = vmatpush.msra.mxu0 0.0
        %443 = vmatpush.msra.mxu0 0.0
        %444 = vmatpush.msra.mxu0 %v427
        %445 = vmatmul.f32.gmra.mxu0 %v423
        %v446 = vpop.f32.mrf.mxu0
        %v447 = vadd.f32 %v420, %v446
        %448 = vdwg.mxu0
        %v449 = vmul.f32 %v447, 0.5
        %v450 = vtanh.pop %v449
        %v451 = vadd.f32 %v450, 1.0
        %v452 = vmul.f32 %v451, 0.5
        %v453 = vld [vmem:[%s7] sm:$0xff]
        %v454 = vld [vmem:[%s7 + $0x8] sm:$0x1]
        %v456 = vsel %vm395, %v453, 0
        %v459 = vsel %vm395, %v454, 0
        %461 = vmatpush.msra.mxu0 0.0
        %462 = vmatpush.msra.mxu0 0.0
        %463 = vmatpush.msra.mxu0 0.0
        %464 = vmatpush.msra.mxu0 0.0
        %465 = vmatpush.msra.mxu0 0.0
        %466 = vmatpush.msra.mxu0 0.0
        %467 = vmatpush.msra.mxu0 0.0
        %468 = vmatpush.msra.mxu0 0.0
        %469 = vmatpush.msra.mxu0 0.0
        %470 = vmatpush.msra.mxu0 0.0
        %471 = vmatpush.msra.mxu0 0.0
        %472 = vmatpush.msra.mxu0 0.0
        %473 = vmatpush.msra.mxu0 0.0
        %474 = vmatpush.msra.mxu0 0.0
        %475 = vmatpush.msra.mxu0 0.0
        %476 = vmatpush.msra.mxu0 %v383
        %477 = vmatmul.f32.gmra.mxu0 %v456
        %v478 = vpop.f32.mrf.mxu0
        %v479 = vadd.f32 0.0, %v478
        %480 = vmatmul.f32.gmra.mxu0 %v459
        %v481 = vpop.f32.mrf.mxu0
        %v482 = vadd.f32 0.0, %v481
        %483 = vdwg.mxu0
        %484 = vmatpush.msra.mxu0 0.0
        %485 = vmatpush.msra.mxu0 0.0
        %486 = vmatpush.msra.mxu0 0.0
        %487 = vmatpush.msra.mxu0 0.0
        %488 = vmatpush.msra.mxu0 0.0
        %489 = vmatpush.msra.mxu0 0.0
        %490 = vmatpush.msra.mxu0 0.0
        %491 = vmatpush.msra.mxu0 0.0
        %492 = vmatpush.msra.mxu0 0.0
        %493 = vmatpush.msra.mxu0 0.0
        %494 = vmatpush.msra.mxu0 0.0
        %495 = vmatpush.msra.mxu0 0.0
        %496 = vmatpush.msra.mxu0 0.0
        %497 = vmatpush.msra.mxu0 0.0
        %498 = vmatpush.msra.mxu0 0.0
        %499 = vmatpush.msra.mxu0 %v384
        %500 = vmatmul.f32.gmra.mxu0 %v456
        %v501 = vpop.f32.mrf.mxu0
        %v502 = vadd.f32 0.0, %v501
        %503 = vmatmul.f32.gmra.mxu0 %v459
        %v504 = vpop.f32.mrf.mxu0
        %v505 = vadd.f32 0.0, %v504
        %506 = vdwg.mxu0
        %507 = vrot.lane.b32.xlu0 %v479, 17
        %v508 = vpop.permute.xlu0 %507
        %509 = vrot.lane.b32.xlu0 %v502, 17
        %v510 = vpop.permute.xlu0 %509
        %vm511 = vcmp.lt.s32.totalorder %v393, 17
        %v512 = vsel %vm511, %v508, %v510
        %v513 = vsel %vm511, %v510, %v508
        %v514 = vld [vmem:[#allocation8] ss:$8 sm:$0x3]
        %v516 = vperm.slane %v514, 0
        %v517 = vperm.slane %v514, 1
        %v520 = vmul.f32 %v513, %v516
        %v521 = vmul.f32 %v512, %v517
        %v522 = vadd.f32 %v520, 0.0
        %v523 = vadd.f32 %v521, 0.0
        %v526 = vrot.slane %v479, 1
        %v527 = vrot.slane %v502, 1
        %530 = vrot.lane.b32.xlu0 %v526, 16
        %v531 = vpop.permute.xlu0 %530
        %532 = vrot.lane.b32.xlu0 %v527, 16
        %v533 = vpop.permute.xlu0 %532
        %vm534 = vcmp.lt.s32.totalorder %v393, 16
        %v535 = vsel %vm534, %v531, %v533
        %v536 = vsel %vm534, %v533, %v531
        %s537 = scalar_lea.vmem [#allocation8], 1
        %v538 = vld [vmem:[%s537] ss:$8 sm:$0x3]
        %v540 = vperm.slane %v538, 0
        %v541 = vperm.slane %v538, 1
        %v544 = vmul.f32 %v536, %v540
        %v545 = vmul.f32 %v535, %v541
        %v546 = vadd.f32 %v522, %v544
        %v547 = vadd.f32 %v523, %v545
        %v548 = vrot.slane %v479, 2
        %v549 = vrot.slane %v502, 2
        %552 = vrot.lane.b32.xlu0 %v548, 15
        %v553 = vpop.permute.xlu0 %552
        %554 = vrot.lane.b32.xlu0 %v549, 15
        %v555 = vpop.permute.xlu0 %554
        %vm556 = vcmp.lt.s32.totalorder %v393, 15
        %v557 = vsel %vm556, %v553, %v555
        %v558 = vsel %vm556, %v555, %v553
        %s559 = scalar_lea.vmem [#allocation8], 2
        %v560 = vld [vmem:[%s559] ss:$8 sm:$0x3]
        %v562 = vperm.slane %v560, 0
        %v563 = vperm.slane %v560, 1
        %v566 = vmul.f32 %v558, %v562
        %v567 = vmul.f32 %v557, %v563
        %v568 = vadd.f32 %v546, %v566
        %v569 = vadd.f32 %v547, %v567
        %v570 = vrot.slane %v479, 3
        %v571 = vrot.slane %v502, 3
        %574 = vrot.lane.b32.xlu0 %v570, 1
        %v575 = vpop.permute.xlu0 %574
        %576 = vrot.lane.b32.xlu0 %v571, 1
        %v577 = vpop.permute.xlu0 %576
        %vm578 = vcmp.lt.s32.totalorder %v393, 1
        %v579 = vsel %vm578, %v575, %v577
        %v580 = vsel %vm578, %v577, %v575
        %s581 = scalar_lea.vmem [#allocation8], 3
        %v582 = vld [vmem:[%s581] ss:$8 sm:$0x3]
        %v584 = vperm.slane %v582, 0
        %v585 = vperm.slane %v582, 1
        %v588 = vmul.f32 %v580, %v584
        %v589 = vmul.f32 %v579, %v585
        %v590 = vadd.f32 %v568, %v588
        %v591 = vadd.f32 %v569, %v589
        %s592 = scalar_lea.vmem [#allocation8], 4
        %v593 = vld [vmem:[%s592] ss:$8 sm:$0x3]
        %v595 = vperm.slane %v593, 0
        %v596 = vperm.slane %v593, 1
        %v599 = vmul.f32 %v479, %v595
        %v600 = vmul.f32 %v502, %v596
        %v603 = vrot.slane %v599, 4
        %v604 = vrot.slane %v600, 4
        %v607 = vadd.f32 %v590, %v603
        %v608 = vadd.f32 %v591, %v604
        %v609 = vrot.slane %v479, 5
        %v610 = vrot.slane %v502, 5
        %613 = vrot.lane.b32.xlu0 %v609, 127
        %v614 = vpop.permute.xlu0 %613
        %615 = vrot.lane.b32.xlu0 %v610, 127
        %v616 = vpop.permute.xlu0 %615
        %vm617 = vcmp.lt.s32.totalorder %v393, 127
        %v618 = vsel %vm617, %v614, %v616
        %v619 = vsel %vm617, %v616, %v614
        %s620 = scalar_lea.vmem [#allocation8], 5
        %v621 = vld [vmem:[%s620] ss:$8 sm:$0x3]
        %v623 = vperm.slane %v621, 0
        %v624 = vperm.slane %v621, 1
        %v627 = vmul.f32 %v618, %v623
        %v628 = vmul.f32 %v619, %v624
        %v629 = vadd.f32 %v607, %v627
        %v630 = vadd.f32 %v608, %v628
        %v631 = vrot.slane %v479, 6
        %v632 = vrot.slane %v502, 6
        %635 = vrot.lane.b32.xlu0 %v631, 113
        %v636 = vpop.permute.xlu0 %635
        %637 = vrot.lane.b32.xlu0 %v632, 113
        %v638 = vpop.permute.xlu0 %637
        %vm639 = vcmp.lt.s32.totalorder %v393, 113
        %v640 = vsel %vm639, %v636, %v638
        %v641 = vsel %vm639, %v638, %v636
        %s642 = scalar_lea.vmem [#allocation8], 6
        %v643 = vld [vmem:[%s642] ss:$8 sm:$0x3]
        %v645 = vperm.slane %v643, 0
        %v646 = vperm.slane %v643, 1
        %v649 = vmul.f32 %v640, %v645
        %v650 = vmul.f32 %v641, %v646
        %v651 = vadd.f32 %v629, %v649
        %v652 = vadd.f32 %v630, %v650
        %v653 = vrot.slane %v479, 7
        %v654 = vrot.slane %v502, 7
        %657 = vrot.lane.b32.xlu0 %v653, 112
        %v658 = vpop.permute.xlu0 %657
        %659 = vrot.lane.b32.xlu0 %v654, 112
        %v660 = vpop.permute.xlu0 %659
        %vm661 = vcmp.lt.s32.totalorder %v393, 112
        %v662 = vsel %vm661, %v658, %v660
        %v663 = vsel %vm661, %v660, %v658
        %s664 = scalar_lea.vmem [#allocation8], 7
        %v665 = vld [vmem:[%s664] ss:$8 sm:$0x3]
        %v667 = vperm.slane %v665, 0
        %v668 = vperm.slane %v665, 1
        %v671 = vmul.f32 %v662, %v667
        %v672 = vmul.f32 %v663, %v668
        %v673 = vadd.f32 %v651, %v671
        %v674 = vadd.f32 %v652, %v672
        %675 = vrot.lane.b32.xlu0 %v482, 111
        %v676 = vpop.permute.xlu0 %675
        %677 = vrot.lane.b32.xlu0 %v505, 111
        %v678 = vpop.permute.xlu0 %677
        %vm679 = vcmp.lt.s32.totalorder %v393, 111
        %v680 = vsel %vm679, %v676, %v678
        %v681 = vsel %vm679, %v678, %v676
        %s682 = scalar_lea.vmem [#allocation8], 16
        %v683 = vld [vmem:[%s682] ss:$8 sm:$0x3]
        %v685 = vperm.slane %v683, 0
        %v686 = vperm.slane %v683, 1
        %v689 = vmul.f32 %v680, %v685
        %v690 = vmul.f32 %v681, %v686
        %v691 = vadd.f32 %v673, %v689
        %v692 = vadd.f32 %v674, %v690
        %s693 = sld [smem:[#allocation2]]
        %v694 = vstv %s693
        %v695 = vadd.f32 %v691, %v694
        %v696 = vadd.f32 %v692, %v694
        %v697 = vmul.f32 %v695, 0.5
        %v698 = vmul.f32 %v696, 0.5
        %v699 = vtanh.pop %v697
        %v700 = vtanh.pop %v698
        %v701 = vadd.f32 %v699, 1.0
        %v702 = vadd.f32 %v700, 1.0
        %v703 = vmul.f32 %v701, 0.5
        %v704 = vmul.f32 %v702, 0.5
        %s705 = sld [smem:[#allocation3]]
        %v706 = vperm.slane %v452, 0
        %v707 = vlaneseq
        %v708 = vshrl.u32 %v707, 7
        %710 = vset.pattern.permute.xlu0 %v708
        %711 = vperm.xlu0 %710, %v706
        %v712 = vpop.permute.xlu0 %711
        %v713 = vstv %s705
        %v714 = vmul.f32 %v713, %v712
        %s715 = sld [smem:[#allocation3 + $0x1]]
        %v716 = vstv %s715
        %v717 = vmul.f32 %v716, %v703
        %v718 = vmul.f32 %v716, %v704
        %v719 = vperm.slane %v717, 0
        %v720 = vperm.slane %v718, 0
        %v721 = vadd.f32 %v714, %v719
        %v722 = vadd.f32 %v714, %v720
        %v723 = vld [vmem:[%s341] sm:$0xff]
        %v724 = vld [vmem:[%s341 + $0x8] sm:$0xff]
        %v725 = vmul.f32 %v721, %v723
        %v726 = vmul.f32 %v722, %v724
        %727 = vst [vmem:[%s382] sm:$0xff] %v725
        %728 = vst [vmem:[%s382 + $0x8] sm:$0xff] %v726
        %s729 = sand.u32 %s231, 1
        %s730 = scalar_lea.sflag [#allocation5], %s729
        %s731 = sand.u32 %s231, 1
        %s732 = smul.addr %s731, 16
        %s733 = scalar_lea.vmem [#allocation10], %s732
        // Predicated region
        $region69: #{tpu_custom_call.1} parent=55 // pred_check
          %p734 = pneg %p241
        $region70: #{tpu_custom_call.1} parent=55 // pred_check_branch
          %736 = sbr.rel (%p734) target = $region72
        $region71: #{tpu_custom_call.1} parent=55 // pred_region
          %738 = vsyncadd %s730, 0
          %s739 = smul.addr %s29, 2
          %s740 = smul.addr %s739, 8
          %s741 = scalar_lea.hbm %s9, %s740
          %s743 = sshll.u32 %s733, 4
          %s744 = int_to_ptr.vmem [resolvable:$true] %s743
          %s745 = sshll.u32 %s741, 4
          %s746 = int_to_ptr.hbm [resolvable:$true] %s745
          %748 = dma.vmem_to_hbm [thread:$0]  %s744, 256, %s746, %s730
        $region72: #{tpu_custom_call.1} parent=55 // pred_fallthru
          _
      $region56: #{tpu_custom_call.1} parent=5 // pred_fallthru
        _
      %p749 = scmp.le.s32.totalorder 2, %s24
      // Predicated region
      $region73: #{tpu_custom_call.1} parent=5 // pred_check
        %p750 = pneg %p749
      $region74: #{tpu_custom_call.1} parent=5 // pred_check_branch
        %752 = sbr.rel (%p750) target = $region76
      $region75: #{tpu_custom_call.1} parent=5 // pred_region
        %s753 = ssub.s32 %s24, 2
        // Predicated region
        $region77: #{tpu_custom_call.1} parent=75 // pred_check
          %p754 = pneg %p247
        $region78: #{tpu_custom_call.1} parent=75 // pred_check_branch
          %756 = sbr.rel (%p754) target = $region80
        $region79: #{tpu_custom_call.1} parent=75 // pred_region
          %s757 = sand.u32 %s232, 1
          %s758 = scalar_lea.sflag [#allocation5], %s757
          %s759 = sand.u32 %s232, 1
          %s760 = smul.addr %s759, 16
          %s761 = scalar_lea.vmem [#allocation10], %s760
          %763 = dma.done %s758, 256
        $region80: #{tpu_custom_call.1} parent=75 // pred_fallthru
          _
      $region76: #{tpu_custom_call.1} parent=5 // pred_fallthru
        _
    $region6: #{tpu_custom_call.1} parent=1 // loop_footer
      %s28 = sadd.s32 1, %s24
    $region7: #{tpu_custom_call.1} parent=1 // loop_footer_branch
      %23 = sbr.rel target = $region3
    $region8: #{tpu_custom_call.1} parent=1 // loop_exit
      _
    %764 = vsyncpa [#allocation4], 1
    %s765 = scalar_lea.sflag [#allocation4], 1
    %766 = vsyncpa %s765, 1
    %767 = vsyncpa [#allocation9], 1
    %768 = vsyncpa [#allocation5], 1
    %s769 = scalar_lea.sflag [#allocation5], 1
    %770 = vsyncpa %s769, 1
    %771 = vsyncpa [#allocation6], 1
    %s772 = scalar_lea.sflag [#allocation6], 1
    %773 = vsyncpa %s772, 1

</llo_original>
